<compile_context>
chip_gen: v6e
topology: v6e:2x2x1
jax: 0.10.0
libtpu: 0.0.40
codegen_flags: <defaults>
</compile_context>

<pallas_src>
import jax
import jax.numpy as jnp
from jax.experimental import pallas as pl
from jax.experimental.pallas import tpu as pltpu

LANE = 128
IN_FEATURES = 28 * 28   # 784
H1 = 128
H2 = 64
OUT = 10
OUT_PAD = 16            # logits padded to 16 lanes inside the kernel / output array


def mlp_kernel(x_ref, w1_ref, b1_ref, w2_ref, b2_ref, w3_ref, b3_ref, o_ref):
    # x: [TB, 784] f32 (cast to bf16 in-kernel); w1: [784,128] bf16;
    # w2: [128,128] bf16 (cols 64.. zero-padded); w3: [128,16] bf16 (rows 64.. / cols 10..
    # zero-padded); biases f32; output: [TB, 16] f32 (lanes 10..15 are zeros).
    x = x_ref[...].astype(jnp.bfloat16)                       # cast under DMA slack

    h1 = jnp.dot(x, w1_ref[...], preferred_element_type=jnp.float32) + b1_ref[...]
    h1 = jnp.maximum(h1, 0.0).astype(jnp.bfloat16)            # ReLU (VPU), back to bf16 for MXU

    h2 = jnp.dot(h1, w2_ref[...], preferred_element_type=jnp.float32) + b2_ref[...]
    h2 = jnp.maximum(h2, 0.0).astype(jnp.bfloat16)            # padded lanes stay exactly 0

    logits = jnp.dot(h2, w3_ref[...], preferred_element_type=jnp.float32) + b3_ref[...]
    o_ref[...] = logits                                       # narrow (16-lane) f32 store


def _pad_cols(a, n):
    pad = n - a.shape[-1]
    return a if pad == 0 else jnp.pad(a, ((0, 0), (0, pad)))


def _pad_rows(a, n):
    pad = n - a.shape[0]
    return a if pad == 0 else jnp.pad(a, ((0, pad), (0, 0)))


def _round_up(n, m):
    return ((n + m - 1) // m) * m


def prepare_params(params):
    """Cast weights to bf16 and zero-pad to kernel shapes. Biases stay f32."""
    w1 = params["w1"].astype(jnp.bfloat16)                                   # [784, 128]
    b1 = params["b1"].astype(jnp.float32)                                    # [1, 128]
    w2 = _pad_cols(params["w2"], LANE).astype(jnp.bfloat16)                  # [128, 128]
    b2 = _pad_cols(params["b2"], LANE).astype(jnp.float32)                   # [1, 128]
    w3 = _pad_cols(_pad_rows(params["w3"], LANE), OUT_PAD).astype(jnp.bfloat16)  # [128, 16]
    b3 = _pad_cols(params["b3"], OUT_PAD).astype(jnp.float32)                # [1, 16]
    return w1, b1, w2, b2, w3, b3


def simple_nn_forward(x_nchw, params, *, tile_b=2048):
    """Forward pass matching SimpleNN.forward.

    Args:
      x_nchw: [B, 1, 28, 28] float32 (NCHW, as in PyTorch)
      params: dict with w1 [784,128], b1 [1,128], w2 [128,64], b2 [1,64],
              w3 [64,10], b3 [1,10]  (w stored [in, out], i.e. torch W.T)
    Returns:
      logits [B, 10] float32
    """
    B = x_nchw.shape[0]
    x = x_nchw.reshape(B, IN_FEATURES)           # layout-preserving view, stays f32 in HBM

    # Batch tile: >=2 grid tiles when B allows (v7x megacore), rows a multiple of 16,
    # capped at tile_b (TB=2048 f32 tile: ~6.4 MB, 2-deep ~12.8 MB -> fits 32 MB scoped VMEM).
    tb = max(16, min(tile_b, _round_up(pl.cdiv(B, 2), 16)))
    grid = pl.cdiv(B, tb)                        # no jnp.pad: Pallas masks the boundary tile

    w1, b1, w2, b2, w3, b3 = prepare_params(params)

    const = lambda shape: pl.BlockSpec(shape, lambda i: (0, 0))  # weights resident across grid

    flops = 2 * B * (IN_FEATURES * H1 + H1 * LANE + LANE * OUT_PAD)
    bytes_accessed = (
        B * IN_FEATURES * 4                                   # f32 x stream (dominant)
        + (w1.size + w2.size + w3.size) * 2                   # bf16 weights (resident)
        + (b1.size + b2.size + b3.size) * 4                   # f32 biases
        + B * OUT_PAD * 4                                     # narrow f32 output
    )

    out = pl.pallas_call(
        mlp_kernel,
        out_shape=jax.ShapeDtypeStruct((B, OUT_PAD), jnp.float32),
        grid_spec=pltpu.PrefetchScalarGridSpec(
            num_scalar_prefetch=0,
            grid=(grid,),
            in_specs=[
                pl.BlockSpec((tb, IN_FEATURES), lambda i: (i, 0)),   # streamed f32 x tiles
                const(w1.shape), const(b1.shape),
                const(w2.shape), const(b2.shape),
                const(w3.shape), const(b3.shape),
            ],
            out_specs=pl.BlockSpec((tb, OUT_PAD), lambda i: (i, 0)),
        ),
        compiler_params=pltpu.CompilerParams(
            dimension_semantics=("parallel",),                 # shard batch tiles across TCs
            vmem_limit_bytes=32 * 1024 * 1024,                 # explicit, portable incl. v5e
        ),
        cost_estimate=pl.CostEstimate(
            flops=flops, transcendentals=0, bytes_accessed=bytes_accessed),
    )(x, w1, b1, w2, b2, w3, b3)

    return out[:, :OUT]


def init_params(key):
    """Deterministic init matching nn.Linear shapes (uniform +/-1/sqrt(fan_in))."""
    def linear(key, fan_in, fan_out):
        kw, kb = jax.random.split(key)
        bound = 1.0 / jnp.sqrt(fan_in)
        w = jax.random.uniform(kw, (fan_in, fan_out), jnp.float32, -bound, bound)
        b = jax.random.uniform(kb, (1, fan_out), jnp.float32, -bound, bound)
        return w, b

    k1, k2, k3 = jax.random.split(key, 3)
    w1, b1 = linear(k1, IN_FEATURES, H1)
    w2, b2 = linear(k2, H1, H2)
    w3, b3 = linear(k3, H2, OUT)
    return {"w1": w1, "b1": b1, "w2": w2, "b2": b2, "w3": w3, "b3": b3}


if __name__ == "__main__":
    key = jax.random.PRNGKey(0)
    k_params, k_x = jax.random.split(key)

    params = init_params(k_params)
    B = 2
    x = jax.random.normal(k_x, (B, 1, 28, 28), jnp.float32)  # NCHW like PyTorch

    fwd = jax.jit(simple_nn_forward)
    logits = fwd(x, params)
    jax.block_until_ready(logits)

    # Reference check in plain JAX f32 (same math as the PyTorch module).
    # Kernel uses bf16 operands with f32 accumulation -> loose tolerance.
    xf = x.reshape(B, -1)
    h1 = jnp.maximum(xf @ params["w1"] + params["b1"], 0.0)
    h2 = jnp.maximum(h1 @ params["w2"] + params["b2"], 0.0)
    ref = h2 @ params["w3"] + params["b3"]
    assert logits.shape == (B, 10)
    assert jnp.allclose(logits, ref, atol=3e-2, rtol=3e-2), (
        f"max abs err {jnp.max(jnp.abs(logits - ref))}")

    print("KERNEL_OK")
</pallas_src>

<mosaic_0001>
module attributes {stable_mosaic.version = 11 : i64} {
  func.func @mlp_kernel(%arg0: i32, %arg1: memref<16x784xf32, #tpu.memory_space<vmem>>, %arg2: memref<784x128xbf16, #tpu.memory_space<vmem>>, %arg3: memref<1x128xf32, #tpu.memory_space<vmem>>, %arg4: memref<128x128xbf16, #tpu.memory_space<vmem>>, %arg5: memref<1x128xf32, #tpu.memory_space<vmem>>, %arg6: memref<128x16xbf16, #tpu.memory_space<vmem>>, %arg7: memref<1x16xf32, #tpu.memory_space<vmem>>, %arg8: memref<16x16xf32, #tpu.memory_space<vmem>>) attributes {dimension_semantics = [#tpu.dimension_semantics<parallel>], iteration_bounds = array<i64: 1>, scalar_prefetch = 0 : i64, scratch_operands = 0 : i64, tpu.core_type = #tpu.core_type<tc>, window_params = [{transform_indices = @transform_0, window_bounds = array<i64: 16, 784>}, {pipeline_mode = #tpu.pipeline_mode<synchronous>, transform_indices = @transform_1, window_bounds = array<i64: 784, 128>}, {pipeline_mode = #tpu.pipeline_mode<synchronous>, transform_indices = @transform_2, window_bounds = array<i64: 1, 128>}, {pipeline_mode = #tpu.pipeline_mode<synchronous>, transform_indices = @transform_3, window_bounds = array<i64: 128, 128>}, {pipeline_mode = #tpu.pipeline_mode<synchronous>, transform_indices = @transform_4, window_bounds = array<i64: 1, 128>}, {pipeline_mode = #tpu.pipeline_mode<synchronous>, transform_indices = @transform_5, window_bounds = array<i64: 128, 16>}, {pipeline_mode = #tpu.pipeline_mode<synchronous>, transform_indices = @transform_6, window_bounds = array<i64: 1, 16>}, {transform_indices = @transform_7, window_bounds = array<i64: 16, 16>}]} {
    %c0 = arith.constant 0 : index
    %c0_0 = arith.constant 0 : index
    %0 = vector.load %arg1[%c0, %c0_0] : memref<16x784xf32, #tpu.memory_space<vmem>>, vector<16x784xf32>
    %1 = arith.truncf %0 : vector<16x784xf32> to vector<16x784xbf16>
    %c0_1 = arith.constant 0 : index
    %c0_2 = arith.constant 0 : index
    %2 = vector.load %arg2[%c0_1, %c0_2] : memref<784x128xbf16, #tpu.memory_space<vmem>>, vector<784x128xbf16>
    %cst = arith.constant dense<0.000000e+00> : vector<16x128xf32>
    %3 = tpu.matmul %1, %2, %cst {dimension_numbers = #tpu.dot_dimension_numbers<[1], [0], [0], [1], [0, 0, 1, 1], [], []>} : vector<16x784xbf16>, vector<784x128xbf16>, vector<16x128xf32> -> vector<16x128xf32>
    %c0_3 = arith.constant 0 : index
    %c0_4 = arith.constant 0 : index
    %4 = vector.load %arg3[%c0_3, %c0_4] : memref<1x128xf32, #tpu.memory_space<vmem>>, vector<1x128xf32>
    %5 = vector.broadcast %4 : vector<1x128xf32> to vector<16x128xf32>
    %6 = arith.addf %3, %5 : vector<16x128xf32>
    %cst_5 = arith.constant 0.000000e+00 : f32
    %7 = vector.broadcast %cst_5 : f32 to vector<16x128xf32>
    %8 = arith.maximumf %6, %7 : vector<16x128xf32>
    %9 = arith.truncf %8 : vector<16x128xf32> to vector<16x128xbf16>
    %c0_6 = arith.constant 0 : index
    %c0_7 = arith.constant 0 : index
    %10 = vector.load %arg4[%c0_6, %c0_7] : memref<128x128xbf16, #tpu.memory_space<vmem>>, vector<128x128xbf16>
    %cst_8 = arith.constant dense<0.000000e+00> : vector<16x128xf32>
    %11 = tpu.matmul %9, %10, %cst_8 {dimension_numbers = #tpu.dot_dimension_numbers<[1], [0], [0], [1], [0, 0, 1, 1], [], []>} : vector<16x128xbf16>, vector<128x128xbf16>, vector<16x128xf32> -> vector<16x128xf32>
    %c0_9 = arith.constant 0 : index
    %c0_10 = arith.constant 0 : index
    %12 = vector.load %arg5[%c0_9, %c0_10] : memref<1x128xf32, #tpu.memory_space<vmem>>, vector<1x128xf32>
    %13 = vector.broadcast %12 : vector<1x128xf32> to vector<16x128xf32>
    %14 = arith.addf %11, %13 : vector<16x128xf32>
    %cst_11 = arith.constant 0.000000e+00 : f32
    %15 = vector.broadcast %cst_11 : f32 to vector<16x128xf32>
    %16 = arith.maximumf %14, %15 : vector<16x128xf32>
    %17 = arith.truncf %16 : vector<16x128xf32> to vector<16x128xbf16>
    %c0_12 = arith.constant 0 : index
    %c0_13 = arith.constant 0 : index
    %18 = vector.load %arg6[%c0_12, %c0_13] : memref<128x16xbf16, #tpu.memory_space<vmem>>, vector<128x16xbf16>
    %cst_14 = arith.constant dense<0.000000e+00> : vector<16x16xf32>
    %19 = tpu.matmul %17, %18, %cst_14 {dimension_numbers = #tpu.dot_dimension_numbers<[1], [0], [0], [1], [0, 0, 1, 1], [], []>} : vector<16x128xbf16>, vector<128x16xbf16>, vector<16x16xf32> -> vector<16x16xf32>
    %c0_15 = arith.constant 0 : index
    %c0_16 = arith.constant 0 : index
    %20 = vector.load %arg7[%c0_15, %c0_16] : memref<1x16xf32, #tpu.memory_space<vmem>>, vector<1x16xf32>
    %21 = vector.broadcast %20 : vector<1x16xf32> to vector<16x16xf32>
    %22 = arith.addf %19, %21 : vector<16x16xf32>
    %c0_17 = arith.constant 0 : index
    %c0_18 = arith.constant 0 : index
    %23 = vector.load %arg8[%c0_17, %c0_18] : memref<16x16xf32, #tpu.memory_space<vmem>>, vector<16x16xf32>
    tpu.vector_store %arg8[%c0_17, %c0_18], %22 {strides = array<i32>} : memref<16x16xf32, #tpu.memory_space<vmem>>, vector<16x16xf32>,
    return
  }
  func.func @transform_0(%arg0: i32) -> (i32, i32) {
    %c0_i32 = arith.constant 0 : i32
    %c0_i32_0 = arith.constant 0 : i32
    return %arg0, %c0_i32 : i32, i32
  }
  func.func @transform_1(%arg0: i32) -> (i32, i32) {
    %c0_i32 = arith.constant 0 : i32
    %c0_i32_0 = arith.constant 0 : i32
    %c0_i32_1 = arith.constant 0 : i32
    return %c0_i32, %c0_i32_0 : i32, i32
  }
  func.func @transform_2(%arg0: i32) -> (i32, i32) {
    %c0_i32 = arith.constant 0 : i32
    %c0_i32_0 = arith.constant 0 : i32
    %c0_i32_1 = arith.constant 0 : i32
    return %c0_i32, %c0_i32_0 : i32, i32
  }
  func.func @transform_3(%arg0: i32) -> (i32, i32) {
    %c0_i32 = arith.constant 0 : i32
    %c0_i32_0 = arith.constant 0 : i32
    %c0_i32_1 = arith.constant 0 : i32
    return %c0_i32, %c0_i32_0 : i32, i32
  }
  func.func @transform_4(%arg0: i32) -> (i32, i32) {
    %c0_i32 = arith.constant 0 : i32
    %c0_i32_0 = arith.constant 0 : i32
    %c0_i32_1 = arith.constant 0 : i32
    return %c0_i32, %c0_i32_0 : i32, i32
  }
  func.func @transform_5(%arg0: i32) -> (i32, i32) {
    %c0_i32 = arith.constant 0 : i32
    %c0_i32_0 = arith.constant 0 : i32
    %c0_i32_1 = arith.constant 0 : i32
    return %c0_i32, %c0_i32_0 : i32, i32
  }
  func.func @transform_6(%arg0: i32) -> (i32, i32) {
    %c0_i32 = arith.constant 0 : i32
    %c0_i32_0 = arith.constant 0 : i32
    %c0_i32_1 = arith.constant 0 : i32
    return %c0_i32, %c0_i32_0 : i32, i32
  }
  func.func @transform_7(%arg0: i32) -> (i32, i32) {
    %c0_i32 = arith.constant 0 : i32
    %c0_i32_0 = arith.constant 0 : i32
    return %arg0, %c0_i32 : i32, i32
  }
}

</mosaic_0001>

<llo_original>
// kernel: simple_nn_forward.1
$region0: #{simple_nn_forward.1}
  #allocation0 [shape = 'u32[]', space=smem, size = 0x4, offset = 0x4, fixed_abs, tag = 'smem constant byte address 0x4 - core index']
  #allocation1 [shape = 'u32[144,128]{1,0:T(1,128)}', space=vmem, size = 0x12000, scoped, tag = 'internal scratch']
  %s0 = inlined_call_operand.vmem [shape: f32[2,784], index: 0, kind: input, shape index: {}]
  %s1 = inlined_call_operand.vmem [shape: bf16[784,128], index: 1, kind: input, shape index: {}]
  %s2 = inlined_call_operand.vmem [shape: f32[1,128], index: 2, kind: input, shape index: {}]
  %s3 = inlined_call_operand.vmem [shape: bf16[128,128], index: 3, kind: input, shape index: {}]
  %s4 = inlined_call_operand.vmem [shape: f32[1,128], index: 4, kind: input, shape index: {}]
  %s5 = inlined_call_operand.vmem [shape: bf16[128,16], index: 5, kind: input, shape index: {}]
  %s6 = inlined_call_operand.vmem [shape: f32[1,16], index: 6, kind: input, shape index: {}]
  %s7 = inlined_call_operand.hbm [shape: f32[2,16], index: 7, kind: output, shape index: {}]
  %s8 = sld [smem:[#allocation0]]
  $region38: #{simple_nn_forward.1} parent=0
    _
  %s10 = ssub.s32 1, %s8
  %s11 = scalar_select 0, %s10, %s8
  $region1: #{simple_nn_forward.1} parent=0
    #allocation2 [shape = 'u8[8192]{0}', space=vmem, size = 0x2000, scoped, tag = 'output window, operand 0, single buffered']
    #allocation3 [shape = 's32[1]{0}', space=sflag, size = 0x4, scoped, tag = 'scoped memory for simple_nn_forward.1']
    %12 = vsyncpa [#allocation3], 0
    // Predicated region
    $region2: #{simple_nn_forward.1} parent=1 // pred_check
      _
    $region3: #{simple_nn_forward.1} parent=1 // pred_check_branch
      %14 = sbr.rel (0) target = $region5
    $region4: #{simple_nn_forward.1} parent=1 // pred_region
      _
    $region5: #{simple_nn_forward.1} parent=1 // pred_fallthru
      _
    // Predicated region
    $region6: #{simple_nn_forward.1} parent=1 // pred_check
      _
    $region7: #{simple_nn_forward.1} parent=1 // pred_check_branch
      %16 = sbr.rel (0) target = $region9
    $region8: #{simple_nn_forward.1} parent=1 // pred_region
      _
    $region9: #{simple_nn_forward.1} parent=1 // pred_fallthru
      _
    // Predicated region
    $region10: #{simple_nn_forward.1} parent=1 // pred_check
      _
    $region11: #{simple_nn_forward.1} parent=1 // pred_check_branch
      %18 = sbr.rel (0) target = $region13
    $region12: #{simple_nn_forward.1} parent=1 // pred_region
      _
    $region13: #{simple_nn_forward.1} parent=1 // pred_fallthru
      _
    // Predicated region
    $region14: #{simple_nn_forward.1} parent=1 // pred_check
      _
    $region15: #{simple_nn_forward.1} parent=1 // pred_check_branch
      %20 = sbr.rel (0) target = $region17
    $region16: #{simple_nn_forward.1} parent=1 // pred_region
      _
    $region17: #{simple_nn_forward.1} parent=1 // pred_fallthru
      _
    // Predicated region
    $region18: #{simple_nn_forward.1} parent=1 // pred_check
      _
    $region19: #{simple_nn_forward.1} parent=1 // pred_check_branch
      %22 = sbr.rel (0) target = $region21
    $region20: #{simple_nn_forward.1} parent=1 // pred_region
      _
    $region21: #{simple_nn_forward.1} parent=1 // pred_fallthru
      _
    // Predicated region
    $region22: #{simple_nn_forward.1} parent=1 // pred_check
      _
    $region23: #{simple_nn_forward.1} parent=1 // pred_check_branch
      %24 = sbr.rel (0) target = $region25
    $region24: #{simple_nn_forward.1} parent=1 // pred_region
      _
    $region25: #{simple_nn_forward.1} parent=1 // pred_fallthru
      _
    // Predicated region
    $region26: #{simple_nn_forward.1} parent=1 // pred_check
      _
    $region27: #{simple_nn_forward.1} parent=1 // pred_check_branch
      %26 = sbr.rel (0) target = $region29
    $region28: #{simple_nn_forward.1} parent=1 // pred_region
      _
    $region29: #{simple_nn_forward.1} parent=1 // pred_fallthru
      _
    %v28 = vld [vmem:[%s0] sm:$0xff]
    %v29 = vld [vmem:[%s0 + $0x8] sm:$0x3f]
    %v30 = vld [vmem:[%s0 + $0xe] sm:$0xff]
    %v31 = vld [vmem:[%s0 + $0x16] sm:$0x3f]
    %v32 = vld [vmem:[%s0 + $0x1c] sm:$0xff]
    %v33 = vld [vmem:[%s0 + $0x24] sm:$0x3f]
    %v34 = vld [vmem:[%s0 + $0x2a] sm:$0xff]
    %v35 = vld [vmem:[%s0 + $0x32] sm:$0x3f]
    %v36 = vld [vmem:[%s0 + $0x38] sm:$0xff]
    %v37 = vld [vmem:[%s0 + $0x40] sm:$0x3f]
    %v38 = vld [vmem:[%s0 + $0x46] sm:$0xff]
    %v39 = vld [vmem:[%s0 + $0x4e] sm:$0x3f]
    %v40 = vld [vmem:[%s0 + $0x54] sm:$0xff]
    %v41 = vld [vmem:[%s0 + $0x5c] sm:$0x3f]
    %v42 = vld [vmem:[%s0 + $0x62] sm:$0xff]
    %v43 = vld [vmem:[%s0 + $0x6a] sm:$0x3f]
    %v60 = vcombine.low %v28, %v30
    %v61 = vcombine.high %v28, %v30
    %v62 = vcombine.low %v32, %v34
    %v63 = vcombine.high %v32, %v34
    %v65 = vunpack.c.l.s4 1983009808
    %v66 = vunpack.c.0.s8 %v65
    %v67 = vlaneseq
    %v68 = vshrl.u32 %v67, 7
    %v69 = vsub.s32 %v66, %v68
    %v70 = vrot.slane %v60, %v69
    %v72 = vunpack.c.l.s4 1983009808
    %v73 = vunpack.c.0.s8 %v72
    %v74 = vlaneseq
    %v75 = vshrl.u32 %v74, 7
    %v76 = vsub.s32 %v73, %v75
    %v77 = vrot.slane %v61, %v76
    %v79 = vunpack.c.l.s4 1983009808
    %v80 = vunpack.c.0.s8 %v79
    %v81 = vlaneseq
    %v82 = vshrl.u32 %v81, 7
    %v83 = vsub.s32 %v80, %v82
    %v84 = vrot.slane %v62, %v83
    %v86 = vunpack.c.l.s4 1983009808
    %v87 = vunpack.c.0.s8 %v86
    %v88 = vlaneseq
    %v89 = vshrl.u32 %v88, 7
    %v90 = vsub.s32 %v87, %v89
    %v91 = vrot.slane %v63, %v90
    %v92 = vcombine.low %v70, %v84
    %v93 = vcombine.high %v70, %v84
    %v94 = vcombine.low %v77, %v91
    %v95 = vcombine.high %v77, %v91
    %v96 = vcombine.low %v29, %v31
    %v97 = vcombine.high %v29, %v31
    %v98 = vcombine.low %v33, %v35
    %v99 = vcombine.high %v33, %v35
    %v101 = vunpack.c.l.s4 1983009808
    %v102 = vunpack.c.0.s8 %v101
    %v103 = vlaneseq
    %v104 = vshrl.u32 %v103, 7
    %v105 = vsub.s32 %v102, %v104
    %v106 = vrot.slane %v96, %v105
    %v108 = vunpack.c.l.s4 1983009808
    %v109 = vunpack.c.0.s8 %v108
    %v110 = vlaneseq
    %v111 = vshrl.u32 %v110, 7
    %v112 = vsub.s32 %v109, %v111
    %v113 = vrot.slane %v97, %v112
    %v115 = vunpack.c.l.s4 1983009808
    %v116 = vunpack.c.0.s8 %v115
    %v117 = vlaneseq
    %v118 = vshrl.u32 %v117, 7
    %v119 = vsub.s32 %v116, %v118
    %v120 = vrot.slane %v98, %v119
    %v122 = vunpack.c.l.s4 1983009808
    %v123 = vunpack.c.0.s8 %v122
    %v124 = vlaneseq
    %v125 = vshrl.u32 %v124, 7
    %v126 = vsub.s32 %v123, %v125
    %v127 = vrot.slane %v99, %v126
    %v128 = vcombine.low %v106, %v120
    %v129 = vcombine.high %v106, %v120
    %v130 = vcombine.low %v113, %v127
    %v131 = vcombine.low %v36, %v38
    %v132 = vcombine.high %v36, %v38
    %v133 = vcombine.low %v40, %v42
    %v134 = vcombine.high %v40, %v42
    %v136 = vunpack.c.l.s4 1983009808
    %v137 = vunpack.c.0.s8 %v136
    %v138 = vlaneseq
    %v139 = vshrl.u32 %v138, 7
    %v140 = vsub.s32 %v137, %v139
    %v141 = vrot.slane %v131, %v140
    %v143 = vunpack.c.l.s4 1983009808
    %v144 = vunpack.c.0.s8 %v143
    %v145 = vlaneseq
    %v146 = vshrl.u32 %v145, 7
    %v147 = vsub.s32 %v144, %v146
    %v148 = vrot.slane %v132, %v147
    %v150 = vunpack.c.l.s4 1983009808
    %v151 = vunpack.c.0.s8 %v150
    %v152 = vlaneseq
    %v153 = vshrl.u32 %v152, 7
    %v154 = vsub.s32 %v151, %v153
    %v155 = vrot.slane %v133, %v154
    %v157 = vunpack.c.l.s4 1983009808
    %v158 = vunpack.c.0.s8 %v157
    %v159 = vlaneseq
    %v160 = vshrl.u32 %v159, 7
    %v161 = vsub.s32 %v158, %v160
    %v162 = vrot.slane %v134, %v161
    %v163 = vcombine.low %v141, %v155
    %v164 = vcombine.high %v141, %v155
    %v165 = vcombine.low %v148, %v162
    %v166 = vcombine.high %v148, %v162
    %v167 = vcombine.low %v37, %v39
    %v168 = vcombine.high %v37, %v39
    %v169 = vcombine.low %v41, %v43
    %v170 = vcombine.high %v41, %v43
    %v172 = vunpack.c.l.s4 1983009808
    %v173 = vunpack.c.0.s8 %v172
    %v174 = vlaneseq
    %v175 = vshrl.u32 %v174, 7
    %v176 = vsub.s32 %v173, %v175
    %v177 = vrot.slane %v167, %v176
    %v179 = vunpack.c.l.s4 1983009808
    %v180 = vunpack.c.0.s8 %v179
    %v181 = vlaneseq
    %v182 = vshrl.u32 %v181, 7
    %v183 = vsub.s32 %v180, %v182
    %v184 = vrot.slane %v168, %v183
    %v186 = vunpack.c.l.s4 1983009808
    %v187 = vunpack.c.0.s8 %v186
    %v188 = vlaneseq
    %v189 = vshrl.u32 %v188, 7
    %v190 = vsub.s32 %v187, %v189
    %v191 = vrot.slane %v169, %v190
    %v193 = vunpack.c.l.s4 1983009808
    %v194 = vunpack.c.0.s8 %v193
    %v195 = vlaneseq
    %v196 = vshrl.u32 %v195, 7
    %v197 = vsub.s32 %v194, %v196
    %v198 = vrot.slane %v170, %v197
    %v199 = vcombine.low %v177, %v191
    %v200 = vcombine.high %v177, %v191
    %v201 = vcombine.low %v184, %v198
    %v216 = vpack.c.bf16 %v163, %v92
    %v217 = vpack.c.bf16 %v164, %v93
    %v218 = vpack.c.bf16 %v165, %v94
    %v219 = vpack.c.bf16 %v166, %v95
    %v220 = vpack.c.bf16 %v199, %v128
    %v221 = vpack.c.bf16 %v200, %v129
    %v222 = vpack.c.bf16 %v201, %v130
    %v223 = vld [vmem:[%s1] sm:$0xf]
    %v224 = vld [vmem:[%s1 + $0x4] sm:$0xf]
    %v225 = vld [vmem:[%s1 + $0x8] sm:$0xf]
    %v226 = vld [vmem:[%s1 + $0xc] sm:$0xf]
    %v227 = vld [vmem:[%s1 + $0x10] sm:$0xf]
    %v228 = vld [vmem:[%s1 + $0x14] sm:$0xf]
    %v229 = vld [vmem:[%s1 + $0x18] sm:$0xf]
    %v230 = vld [vmem:[%s1 + $0x1c] sm:$0xf]
    %v231 = vld [vmem:[%s1 + $0x20] sm:$0xf]
    %v232 = vld [vmem:[%s1 + $0x24] sm:$0xf]
    %v233 = vld [vmem:[%s1 + $0x28] sm:$0xf]
    %v234 = vld [vmem:[%s1 + $0x2c] sm:$0xf]
    %v235 = vld [vmem:[%s1 + $0x30] sm:$0xf]
    %v236 = vld [vmem:[%s1 + $0x34] sm:$0xf]
    %v237 = vld [vmem:[%s1 + $0x38] sm:$0xf]
    %v238 = vld [vmem:[%s1 + $0x3c] sm:$0xf]
    %v239 = vld [vmem:[%s1 + $0x40] sm:$0xf]
    %v240 = vld [vmem:[%s1 + $0x44] sm:$0xf]
    %v241 = vld [vmem:[%s1 + $0x48] sm:$0xf]
    %v242 = vld [vmem:[%s1 + $0x4c] sm:$0xf]
    %v243 = vld [vmem:[%s1 + $0x50] sm:$0xf]
    %v244 = vld [vmem:[%s1 + $0x54] sm:$0xf]
    %v245 = vld [vmem:[%s1 + $0x58] sm:$0xf]
    %v246 = vld [vmem:[%s1 + $0x5c] sm:$0xf]
    %v247 = vld [vmem:[%s1 + $0x60] sm:$0xf]
    %v248 = vld [vmem:[%s1 + $0x64] sm:$0xf]
    %v249 = vld [vmem:[%s1 + $0x68] sm:$0xf]
    %v250 = vld [vmem:[%s1 + $0x6c] sm:$0xf]
    %v251 = vld [vmem:[%s1 + $0x70] sm:$0xf]
    %v252 = vld [vmem:[%s1 + $0x74] sm:$0xf]
    %v253 = vld [vmem:[%s1 + $0x78] sm:$0xf]
    %v254 = vld [vmem:[%s1 + $0x7c] sm:$0xf]
    %v255 = vld [vmem:[%s1 + $0x80] sm:$0xf]
    %v256 = vld [vmem:[%s1 + $0x84] sm:$0xf]
    %v257 = vld [vmem:[%s1 + $0x88] sm:$0xf]
    %v258 = vld [vmem:[%s1 + $0x8c] sm:$0xf]
    %v259 = vld [vmem:[%s1 + $0x90] sm:$0xf]
    %v260 = vld [vmem:[%s1 + $0x94] sm:$0xf]
    %v261 = vld [vmem:[%s1 + $0x98] sm:$0xf]
    %v262 = vld [vmem:[%s1 + $0x9c] sm:$0xf]
    %v263 = vld [vmem:[%s1 + $0xa0] sm:$0xf]
    %v264 = vld [vmem:[%s1 + $0xa4] sm:$0xf]
    %v265 = vld [vmem:[%s1 + $0xa8] sm:$0xf]
    %v266 = vld [vmem:[%s1 + $0xac] sm:$0xf]
    %v267 = vld [vmem:[%s1 + $0xb0] sm:$0xf]
    %v268 = vld [vmem:[%s1 + $0xb4] sm:$0xf]
    %v269 = vld [vmem:[%s1 + $0xb8] sm:$0xf]
    %v270 = vld [vmem:[%s1 + $0xbc] sm:$0xf]
    %v271 = vld [vmem:[%s1 + $0xc0] sm:$0xf]
    %v272 = vld [vmem:[%s1 + $0xc4] sm:$0xf]
    %v273 = vld [vmem:[%s1 + $0xc8] sm:$0xf]
    %v274 = vld [vmem:[%s1 + $0xcc] sm:$0xf]
    %v275 = vld [vmem:[%s1 + $0xd0] sm:$0xf]
    %v276 = vld [vmem:[%s1 + $0xd4] sm:$0xf]
    %v277 = vld [vmem:[%s1 + $0xd8] sm:$0xf]
    %v278 = vld [vmem:[%s1 + $0xdc] sm:$0xf]
    %v279 = vld [vmem:[%s1 + $0xe0] sm:$0xf]
    %v280 = vld [vmem:[%s1 + $0xe4] sm:$0xf]
    %v281 = vld [vmem:[%s1 + $0xe8] sm:$0xf]
    %v282 = vld [vmem:[%s1 + $0xec] sm:$0xf]
    %v283 = vld [vmem:[%s1 + $0xf0] sm:$0xf]
    %v284 = vld [vmem:[%s1 + $0xf4] sm:$0xf]
    %v285 = vld [vmem:[%s1 + $0xf8] sm:$0xf]
    %v286 = vld [vmem:[%s1 + $0xfc] sm:$0xf]
    %v287 = vld [vmem:[%s1 + $0x100] sm:$0xf]
    %v288 = vld [vmem:[%s1 + $0x104] sm:$0xf]
    %v289 = vld [vmem:[%s1 + $0x108] sm:$0xf]
    %v290 = vld [vmem:[%s1 + $0x10c] sm:$0xf]
    %v291 = vld [vmem:[%s1 + $0x110] sm:$0xf]
    %v292 = vld [vmem:[%s1 + $0x114] sm:$0xf]
    %v293 = vld [vmem:[%s1 + $0x118] sm:$0xf]
    %v294 = vld [vmem:[%s1 + $0x11c] sm:$0xf]
    %v295 = vld [vmem:[%s1 + $0x120] sm:$0xf]
    %v296 = vld [vmem:[%s1 + $0x124] sm:$0xf]
    %v297 = vld [vmem:[%s1 + $0x128] sm:$0xf]
    %v298 = vld [vmem:[%s1 + $0x12c] sm:$0xf]
    %v299 = vld [vmem:[%s1 + $0x130] sm:$0xf]
    %v300 = vld [vmem:[%s1 + $0x134] sm:$0xf]
    %v301 = vld [vmem:[%s1 + $0x138] sm:$0xf]
    %v302 = vld [vmem:[%s1 + $0x13c] sm:$0xf]
    %v303 = vld [vmem:[%s1 + $0x140] sm:$0xf]
    %v304 = vld [vmem:[%s1 + $0x144] sm:$0xf]
    %v305 = vld [vmem:[%s1 + $0x148] sm:$0xf]
    %v306 = vld [vmem:[%s1 + $0x14c] sm:$0xf]
    %v307 = vld [vmem:[%s1 + $0x150] sm:$0xf]
    %v308 = vld [vmem:[%s1 + $0x154] sm:$0xf]
    %v309 = vld [vmem:[%s1 + $0x158] sm:$0xf]
    %v310 = vld [vmem:[%s1 + $0x15c] sm:$0xf]
    %v311 = vld [vmem:[%s1 + $0x160] sm:$0xf]
    %v312 = vld [vmem:[%s1 + $0x164] sm:$0xf]
    %v313 = vld [vmem:[%s1 + $0x168] sm:$0xf]
    %v314 = vld [vmem:[%s1 + $0x16c] sm:$0xf]
    %v315 = vld [vmem:[%s1 + $0x170] sm:$0xf]
    %v316 = vld [vmem:[%s1 + $0x174] sm:$0xf]
    %v317 = vld [vmem:[%s1 + $0x178] sm:$0xf]
    %v318 = vld [vmem:[%s1 + $0x17c] sm:$0xf]
    %v319 = vld [vmem:[%s1 + $0x180] sm:$0xf]
    %v320 = vld [vmem:[%s1 + $0x184] sm:$0xf]
    %v321 = vld [vmem:[%s2] sm:$0x1]
    %v323 = vlaneseq
    %v324 = vshrl.u32 %v323, 7
    %v325 = vsub.s32 0, %v324
    %v326 = vrot.slane %v321, %v325
    %v426 = vunpack.c.l.b16 %v223
    %v427 = vunpack.c.l.b16 %v224
    %v428 = vunpack.c.l.b16 %v225
    %v429 = vunpack.c.l.b16 %v226
    %v430 = vunpack.c.l.b16 %v227
    %v431 = vunpack.c.l.b16 %v228
    %v432 = vunpack.c.l.b16 %v229
    %v433 = vunpack.c.l.b16 %v230
    %v434 = vunpack.c.l.b16 %v231
    %v435 = vunpack.c.l.b16 %v232
    %v436 = vunpack.c.l.b16 %v233
    %v437 = vunpack.c.l.b16 %v234
    %v438 = vunpack.c.l.b16 %v235
    %v439 = vunpack.c.l.b16 %v236
    %v440 = vunpack.c.l.b16 %v237
    %v441 = vunpack.c.l.b16 %v238
    %v442 = vunpack.c.l.b16 %v239
    %v443 = vunpack.c.l.b16 %v240
    %v444 = vunpack.c.l.b16 %v241
    %v445 = vunpack.c.l.b16 %v242
    %v446 = vunpack.c.l.b16 %v243
    %v447 = vunpack.c.l.b16 %v244
    %v448 = vunpack.c.l.b16 %v245
    %v449 = vunpack.c.l.b16 %v246
    %v450 = vunpack.c.l.b16 %v247
    %v451 = vunpack.c.l.b16 %v248
    %v452 = vunpack.c.l.b16 %v249
    %v453 = vunpack.c.l.b16 %v250
    %v454 = vunpack.c.l.b16 %v251
    %v455 = vunpack.c.l.b16 %v252
    %v456 = vunpack.c.l.b16 %v253
    %v457 = vunpack.c.l.b16 %v254
    %v458 = vunpack.c.l.b16 %v255
    %v459 = vunpack.c.l.b16 %v256
    %v460 = vunpack.c.l.b16 %v257
    %v461 = vunpack.c.l.b16 %v258
    %v462 = vunpack.c.l.b16 %v259
    %v463 = vunpack.c.l.b16 %v260
    %v464 = vunpack.c.l.b16 %v261
    %v465 = vunpack.c.l.b16 %v262
    %v466 = vunpack.c.l.b16 %v263
    %v467 = vunpack.c.l.b16 %v264
    %v468 = vunpack.c.l.b16 %v265
    %v469 = vunpack.c.l.b16 %v266
    %v470 = vunpack.c.l.b16 %v267
    %v471 = vunpack.c.l.b16 %v268
    %v472 = vunpack.c.l.b16 %v269
    %v473 = vunpack.c.l.b16 %v270
    %v474 = vunpack.c.l.b16 %v271
    %v475 = vunpack.c.l.b16 %v272
    %v476 = vunpack.c.l.b16 %v273
    %v477 = vunpack.c.l.b16 %v274
    %v478 = vunpack.c.l.b16 %v275
    %v479 = vunpack.c.l.b16 %v276
    %v480 = vunpack.c.l.b16 %v277
    %v481 = vunpack.c.l.b16 %v278
    %v482 = vunpack.c.l.b16 %v279
    %v483 = vunpack.c.l.b16 %v280
    %v484 = vunpack.c.l.b16 %v281
    %v485 = vunpack.c.l.b16 %v282
    %v486 = vunpack.c.l.b16 %v283
    %v487 = vunpack.c.l.b16 %v284
    %v488 = vunpack.c.l.b16 %v285
    %v489 = vunpack.c.l.b16 %v286
    %v490 = vunpack.c.l.b16 %v287
    %v491 = vunpack.c.l.b16 %v288
    %v492 = vunpack.c.l.b16 %v289
    %v493 = vunpack.c.l.b16 %v290
    %v494 = vunpack.c.l.b16 %v291
    %v495 = vunpack.c.l.b16 %v292
    %v496 = vunpack.c.l.b16 %v293
    %v497 = vunpack.c.l.b16 %v294
    %v498 = vunpack.c.l.b16 %v295
    %v499 = vunpack.c.l.b16 %v296
    %v500 = vunpack.c.l.b16 %v297
    %v501 = vunpack.c.l.b16 %v298
    %v502 = vunpack.c.l.b16 %v299
    %v503 = vunpack.c.l.b16 %v300
    %v504 = vunpack.c.l.b16 %v301
    %v505 = vunpack.c.l.b16 %v302
    %v506 = vunpack.c.l.b16 %v303
    %v507 = vunpack.c.l.b16 %v304
    %v508 = vunpack.c.l.b16 %v305
    %v509 = vunpack.c.l.b16 %v306
    %v510 = vunpack.c.l.b16 %v307
    %v511 = vunpack.c.l.b16 %v308
    %v512 = vunpack.c.l.b16 %v309
    %v513 = vunpack.c.l.b16 %v310
    %v514 = vunpack.c.l.b16 %v311
    %v515 = vunpack.c.l.b16 %v312
    %v516 = vunpack.c.l.b16 %v313
    %v517 = vunpack.c.l.b16 %v314
    %v518 = vunpack.c.l.b16 %v315
    %v519 = vunpack.c.l.b16 %v316
    %v520 = vunpack.c.l.b16 %v317
    %v521 = vunpack.c.l.b16 %v318
    %v522 = vunpack.c.l.b16 %v319
    %v523 = vunpack.c.l.b16 %v320
    %v524 = vpack.c.b16 %v427, %v426
    %v525 = vpack.c.b16 %v429, %v428
    %v526 = vpack.c.b16 %v431, %v430
    %v527 = vpack.c.b16 %v433, %v432
    %v528 = vpack.c.b16 %v435, %v434
    %v529 = vpack.c.b16 %v437, %v436
    %v530 = vpack.c.b16 %v439, %v438
    %v531 = vpack.c.b16 %v441, %v440
    %v532 = vpack.c.b16 %v443, %v442
    %v533 = vpack.c.b16 %v445, %v444
    %v534 = vpack.c.b16 %v447, %v446
    %v535 = vpack.c.b16 %v449, %v448
    %v536 = vpack.c.b16 %v451, %v450
    %v537 = vpack.c.b16 %v453, %v452
    %v538 = vpack.c.b16 %v455, %v454
    %v539 = vpack.c.b16 %v457, %v456
    %v540 = vpack.c.b16 %v459, %v458
    %v541 = vpack.c.b16 %v461, %v460
    %v542 = vpack.c.b16 %v463, %v462
    %v543 = vpack.c.b16 %v465, %v464
    %v544 = vpack.c.b16 %v467, %v466
    %v545 = vpack.c.b16 %v469, %v468
    %v546 = vpack.c.b16 %v471, %v470
    %v547 = vpack.c.b16 %v473, %v472
    %v548 = vpack.c.b16 %v475, %v474
    %v549 = vpack.c.b16 %v477, %v476
    %v550 = vpack.c.b16 %v479, %v478
    %v551 = vpack.c.b16 %v481, %v480
    %v552 = vpack.c.b16 %v483, %v482
    %v553 = vpack.c.b16 %v485, %v484
    %v554 = vpack.c.b16 %v487, %v486
    %v555 = vpack.c.b16 %v489, %v488
    %v556 = vpack.c.b16 %v491, %v490
    %v557 = vpack.c.b16 %v493, %v492
    %v558 = vpack.c.b16 %v495, %v494
    %v559 = vpack.c.b16 %v497, %v496
    %v560 = vpack.c.b16 %v499, %v498
    %v561 = vpack.c.b16 %v501, %v500
    %v562 = vpack.c.b16 %v503, %v502
    %v563 = vpack.c.b16 %v505, %v504
    %v564 = vpack.c.b16 %v507, %v506
    %v565 = vpack.c.b16 %v509, %v508
    %v566 = vpack.c.b16 %v511, %v510
    %v567 = vpack.c.b16 %v513, %v512
    %v568 = vpack.c.b16 %v515, %v514
    %v569 = vpack.c.b16 %v517, %v516
    %v570 = vpack.c.b16 %v519, %v518
    %v571 = vpack.c.b16 %v521, %v520
    %v572 = vpack.c.b16 %v523, %v522
    %vm622 = vcmask 130048
    %v624 = vsel %vm622, %v222, 0
    %626 = vmatprep.subr.bf16.mxu0 0
    %627 = vmatpush1.bf16.msra.mxu0 %v531
    %628 = vmatprep.subr.bf16.mxu0 0
    %629 = vmatpush1.bf16.msra.mxu0 %v530
    %630 = vmatprep.subr.bf16.mxu0 0
    %631 = vmatpush1.bf16.msra.mxu0 %v529
    %632 = vmatprep.subr.bf16.mxu0 0
    %633 = vmatpush1.bf16.msra.mxu0 %v528
    %634 = vmatprep.subr.bf16.mxu0 0
    %635 = vmatpush1.bf16.msra.mxu0 %v527
    %636 = vmatprep.subr.bf16.mxu0 0
    %637 = vmatpush1.bf16.msra.mxu0 %v526
    %638 = vmatprep.subr.bf16.mxu0 0
    %639 = vmatpush1.bf16.msra.mxu0 %v525
    %640 = vmatprep.subr.bf16.mxu0 0
    %641 = vmatpush1.bf16.msra.mxu0 %v524
    %642 = vmatprep.subr.bf16.mxu0 0
    %643 = vmatpush2.bf16.msra.mxu0 %v539
    %644 = vmatprep.subr.bf16.mxu0 0
    %645 = vmatpush2.bf16.msra.mxu0 %v538
    %646 = vmatprep.subr.bf16.mxu0 0
    %647 = vmatpush2.bf16.msra.mxu0 %v537
    %648 = vmatprep.subr.bf16.mxu0 0
    %649 = vmatpush2.bf16.msra.mxu0 %v536
    %650 = vmatprep.subr.bf16.mxu0 0
    %651 = vmatpush2.bf16.msra.mxu0 %v535
    %652 = vmatprep.subr.bf16.mxu0 0
    %653 = vmatpush2.bf16.msra.mxu0 %v534
    %654 = vmatprep.subr.bf16.mxu0 0
    %655 = vmatpush2.bf16.msra.mxu0 %v533
    %656 = vmatprep.subr.bf16.mxu0 0
    %657 = vmatpush2.bf16.msra.mxu0 %v532
    %658 = vmatprep.mubr.bf16.mxu0 %v217
    %659 = vmatmul.mubr.bf16.gmra.mxu0 %v216
    %v660 = vpop.f32.mrf.mxu0
    %v661 = vadd.f32 %v326, %v660
    %v662 = vpop.f32.mrf.mxu0
    %v663 = vpop.f32.mrf.mxu0
    %v664 = vadd.f32 %v326, %v663
    %v665 = vpop.f32.mrf.mxu0
    %666 = vdwg.mxu0
    %667 = vmatprep.subr.bf16.mxu0 0
    %668 = vmatpush1.bf16.msra.mxu0 %v547
    %669 = vmatprep.subr.bf16.mxu0 0
    %670 = vmatpush1.bf16.msra.mxu0 %v546
    %671 = vmatprep.subr.bf16.mxu0 0
    %672 = vmatpush1.bf16.msra.mxu0 %v545
    %673 = vmatprep.subr.bf16.mxu0 0
    %674 = vmatpush1.bf16.msra.mxu0 %v544
    %675 = vmatprep.subr.bf16.mxu0 0
    %676 = vmatpush1.bf16.msra.mxu0 %v543
    %677 = vmatprep.subr.bf16.mxu0 0
    %678 = vmatpush1.bf16.msra.mxu0 %v542
    %679 = vmatprep.subr.bf16.mxu0 0
    %680 = vmatpush1.bf16.msra.mxu0 %v541
    %681 = vmatprep.subr.bf16.mxu0 0
    %682 = vmatpush1.bf16.msra.mxu0 %v540
    %683 = vmatprep.subr.bf16.mxu0 0
    %684 = vmatpush2.bf16.msra.mxu0 %v555
    %685 = vmatprep.subr.bf16.mxu0 0
    %686 = vmatpush2.bf16.msra.mxu0 %v554
    %687 = vmatprep.subr.bf16.mxu0 0
    %688 = vmatpush2.bf16.msra.mxu0 %v553
    %689 = vmatprep.subr.bf16.mxu0 0
    %690 = vmatpush2.bf16.msra.mxu0 %v552
    %691 = vmatprep.subr.bf16.mxu0 0
    %692 = vmatpush2.bf16.msra.mxu0 %v551
    %693 = vmatprep.subr.bf16.mxu0 0
    %694 = vmatpush2.bf16.msra.mxu0 %v550
    %695 = vmatprep.subr.bf16.mxu0 0
    %696 = vmatpush2.bf16.msra.mxu0 %v549
    %697 = vmatprep.subr.bf16.mxu0 0
    %698 = vmatpush2.bf16.msra.mxu0 %v548
    %699 = vmatprep.mubr.bf16.mxu0 %v219
    %700 = vmatmul.mubr.bf16.gmra.mxu0 %v218
    %v701 = vpop.f32.mrf.mxu0
    %v702 = vadd.f32 %v661, %v701
    %v703 = vpop.f32.mrf.mxu0
    %v704 = vpop.f32.mrf.mxu0
    %v705 = vadd.f32 %v664, %v704
    %v706 = vpop.f32.mrf.mxu0
    %707 = vdwg.mxu0
    %708 = vmatprep.subr.bf16.mxu0 0
    %709 = vmatpush1.bf16.msra.mxu0 %v563
    %710 = vmatprep.subr.bf16.mxu0 0
    %711 = vmatpush1.bf16.msra.mxu0 %v562
    %712 = vmatprep.subr.bf16.mxu0 0
    %713 = vmatpush1.bf16.msra.mxu0 %v561
    %714 = vmatprep.subr.bf16.mxu0 0
    %715 = vmatpush1.bf16.msra.mxu0 %v560
    %716 = vmatprep.subr.bf16.mxu0 0
    %717 = vmatpush1.bf16.msra.mxu0 %v559
    %718 = vmatprep.subr.bf16.mxu0 0
    %719 = vmatpush1.bf16.msra.mxu0 %v558
    %720 = vmatprep.subr.bf16.mxu0 0
    %721 = vmatpush1.bf16.msra.mxu0 %v557
    %722 = vmatprep.subr.bf16.mxu0 0
    %723 = vmatpush1.bf16.msra.mxu0 %v556
    %724 = vmatprep.subr.bf16.mxu0 0
    %725 = vmatpush2.bf16.msra.mxu0 %v571
    %726 = vmatprep.subr.bf16.mxu0 0
    %727 = vmatpush2.bf16.msra.mxu0 %v570
    %728 = vmatprep.subr.bf16.mxu0 0
    %729 = vmatpush2.bf16.msra.mxu0 %v569
    %730 = vmatprep.subr.bf16.mxu0 0
    %731 = vmatpush2.bf16.msra.mxu0 %v568
    %732 = vmatprep.subr.bf16.mxu0 0
    %733 = vmatpush2.bf16.msra.mxu0 %v567
    %734 = vmatprep.subr.bf16.mxu0 0
    %735 = vmatpush2.bf16.msra.mxu0 %v566
    %736 = vmatprep.subr.bf16.mxu0 0
    %737 = vmatpush2.bf16.msra.mxu0 %v565
    %738 = vmatprep.subr.bf16.mxu0 0
    %739 = vmatpush2.bf16.msra.mxu0 %v564
    %740 = vmatprep.mubr.bf16.mxu0 %v221
    %741 = vmatmul.mubr.bf16.gmra.mxu0 %v220
    %v742 = vpop.f32.mrf.mxu0
    %v743 = vadd.f32 %v702, %v742
    %v744 = vpop.f32.mrf.mxu0
    %v745 = vpop.f32.mrf.mxu0
    %v746 = vadd.f32 %v705, %v745
    %v747 = vpop.f32.mrf.mxu0
    %748 = vdwg.mxu0
    %749 = vmatprep.subr.bf16.mxu0 0
    %750 = vmatpush1.bf16.msra.mxu0 0
    %751 = vmatprep.subr.bf16.mxu0 0
    %752 = vmatpush1.bf16.msra.mxu0 0
    %753 = vmatprep.subr.bf16.mxu0 0
    %754 = vmatpush1.bf16.msra.mxu0 0
    %755 = vmatprep.subr.bf16.mxu0 0
    %756 = vmatpush1.bf16.msra.mxu0 0
    %757 = vmatprep.subr.bf16.mxu0 0
    %758 = vmatpush1.bf16.msra.mxu0 0
    %759 = vmatprep.subr.bf16.mxu0 0
    %760 = vmatpush1.bf16.msra.mxu0 0
    %761 = vmatprep.subr.bf16.mxu0 0
    %762 = vmatpush1.bf16.msra.mxu0 0
    %763 = vmatprep.subr.bf16.mxu0 0
    %764 = vmatpush1.bf16.msra.mxu0 %v572
    %765 = vmatprep.subr.bf16.mxu0 0
    %766 = vmatpush2.bf16.msra.mxu0 0
    %767 = vmatprep.subr.bf16.mxu0 0
    %768 = vmatpush2.bf16.msra.mxu0 0
    %769 = vmatprep.subr.bf16.mxu0 0
    %770 = vmatpush2.bf16.msra.mxu0 0
    %771 = vmatprep.subr.bf16.mxu0 0
    %772 = vmatpush2.bf16.msra.mxu0 0
    %773 = vmatprep.subr.bf16.mxu0 0
    %774 = vmatpush2.bf16.msra.mxu0 0
    %775 = vmatprep.subr.bf16.mxu0 0
    %776 = vmatpush2.bf16.msra.mxu0 0
    %777 = vmatprep.subr.bf16.mxu0 0
    %778 = vmatpush2.bf16.msra.mxu0 0
    %779 = vmatprep.subr.bf16.mxu0 0
    %780 = vmatpush2.bf16.msra.mxu0 0
    %781 = vmatprep.mubr.bf16.mxu0 0
    %782 = vmatmul.mubr.bf16.gmra.mxu0 %v624
    %v783 = vpop.f32.mrf.mxu0
    %v784 = vadd.f32 %v743, %v783
    %v785 = vpop.f32.mrf.mxu0
    %v786 = vpop.f32.mrf.mxu0
    %v787 = vadd.f32 %v746, %v786
    %v788 = vpop.f32.mrf.mxu0
    %789 = vdwg.mxu0
    %v790 = vmax.f32 %v784, 0.0
    %v791 = vmax.f32 %v787, 0.0
    %v792 = vpack.c.bf16 %v791, %v790
    %v793 = vld [vmem:[%s3] sm:$0xf]
    %v794 = vld [vmem:[%s3 + $0x4] sm:$0xf]
    %v795 = vld [vmem:[%s3 + $0x8] sm:$0xf]
    %v796 = vld [vmem:[%s3 + $0xc] sm:$0xf]
    %v797 = vld [vmem:[%s3 + $0x10] sm:$0xf]
    %v798 = vld [vmem:[%s3 + $0x14] sm:$0xf]
    %v799 = vld [vmem:[%s3 + $0x18] sm:$0xf]
    %v800 = vld [vmem:[%s3 + $0x1c] sm:$0xf]
    %v801 = vld [vmem:[%s3 + $0x20] sm:$0xf]
    %v802 = vld [vmem:[%s3 + $0x24] sm:$0xf]
    %v803 = vld [vmem:[%s3 + $0x28] sm:$0xf]
    %v804 = vld [vmem:[%s3 + $0x2c] sm:$0xf]
    %v805 = vld [vmem:[%s3 + $0x30] sm:$0xf]
    %v806 = vld [vmem:[%s3 + $0x34] sm:$0xf]
    %v807 = vld [vmem:[%s3 + $0x38] sm:$0xf]
    %v808 = vld [vmem:[%s3 + $0x3c] sm:$0xf]
    %v809 = vld [vmem:[%s4] sm:$0x1]
    %v811 = vlaneseq
    %v812 = vshrl.u32 %v811, 7
    %v813 = vsub.s32 0, %v812
    %v814 = vrot.slane %v809, %v813
    %v832 = vunpack.c.l.b16 %v793
    %v833 = vunpack.c.l.b16 %v794
    %v834 = vunpack.c.l.b16 %v795
    %v835 = vunpack.c.l.b16 %v796
    %v836 = vunpack.c.l.b16 %v797
    %v837 = vunpack.c.l.b16 %v798
    %v838 = vunpack.c.l.b16 %v799
    %v839 = vunpack.c.l.b16 %v800
    %v840 = vunpack.c.l.b16 %v801
    %v841 = vunpack.c.l.b16 %v802
    %v842 = vunpack.c.l.b16 %v803
    %v843 = vunpack.c.l.b16 %v804
    %v844 = vunpack.c.l.b16 %v805
    %v845 = vunpack.c.l.b16 %v806
    %v846 = vunpack.c.l.b16 %v807
    %v847 = vunpack.c.l.b16 %v808
    %v848 = vpack.c.b16 %v833, %v832
    %v849 = vpack.c.b16 %v835, %v834
    %v850 = vpack.c.b16 %v837, %v836
    %v851 = vpack.c.b16 %v839, %v838
    %v852 = vpack.c.b16 %v841, %v840
    %v853 = vpack.c.b16 %v843, %v842
    %v854 = vpack.c.b16 %v845, %v844
    %v855 = vpack.c.b16 %v847, %v846
    %864 = vmatprep.subr.bf16.mxu0 0
    %865 = vmatpush1.bf16.msra.mxu0 %v855
    %866 = vmatprep.subr.bf16.mxu0 0
    %867 = vmatpush1.bf16.msra.mxu0 %v854
    %868 = vmatprep.subr.bf16.mxu0 0
    %869 = vmatpush1.bf16.msra.mxu0 %v853
    %870 = vmatprep.subr.bf16.mxu0 0
    %871 = vmatpush1.bf16.msra.mxu0 %v852
    %872 = vmatprep.subr.bf16.mxu0 0
    %873 = vmatpush1.bf16.msra.mxu0 %v851
    %874 = vmatprep.subr.bf16.mxu0 0
    %875 = vmatpush1.bf16.msra.mxu0 %v850
    %876 = vmatprep.subr.bf16.mxu0 0
    %877 = vmatpush1.bf16.msra.mxu0 %v849
    %878 = vmatprep.subr.bf16.mxu0 0
    %879 = vmatpush1.bf16.msra.mxu0 %v848
    %880 = vmatprep.subr.bf16.mxu0 0
    %881 = vmatpush2.bf16.msra.mxu0 0
    %882 = vmatprep.subr.bf16.mxu0 0
    %883 = vmatpush2.bf16.msra.mxu0 0
    %884 = vmatprep.subr.bf16.mxu0 0
    %885 = vmatpush2.bf16.msra.mxu0 0
    %886 = vmatprep.subr.bf16.mxu0 0
    %887 = vmatpush2.bf16.msra.mxu0 0
    %888 = vmatprep.subr.bf16.mxu0 0
    %889 = vmatpush2.bf16.msra.mxu0 0
    %890 = vmatprep.subr.bf16.mxu0 0
    %891 = vmatpush2.bf16.msra.mxu0 0
    %892 = vmatprep.subr.bf16.mxu0 0
    %893 = vmatpush2.bf16.msra.mxu0 0
    %894 = vmatprep.subr.bf16.mxu0 0
    %895 = vmatpush2.bf16.msra.mxu0 0
    %896 = vmatprep.mubr.bf16.mxu0 0
    %897 = vmatmul.mubr.bf16.gmra.mxu0 %v792
    %v898 = vpop.f32.mrf.mxu0
    %v899 = vadd.f32 %v814, %v898
    %v900 = vpop.f32.mrf.mxu0
    %v901 = vpop.f32.mrf.mxu0
    %v902 = vadd.f32 %v814, %v901
    %v903 = vpop.f32.mrf.mxu0
    %904 = vdwg.mxu0
    %v905 = vmax.f32 %v899, 0.0
    %v906 = vmax.f32 %v902, 0.0
    %v907 = vpack.c.bf16 %v906, %v905
    %v908 = vld [vmem:[%s5] sm:$0xf]
    %v909 = vld [vmem:[%s5 + $0x4] sm:$0xf]
    %v910 = vld [vmem:[%s5 + $0x8] sm:$0xf]
    %v911 = vld [vmem:[%s5 + $0xc] sm:$0xf]
    %v912 = vld [vmem:[%s5 + $0x10] sm:$0xf]
    %v913 = vld [vmem:[%s5 + $0x14] sm:$0xf]
    %v914 = vld [vmem:[%s5 + $0x18] sm:$0xf]
    %v915 = vld [vmem:[%s5 + $0x1c] sm:$0xf]
    %v916 = vld [vmem:[%s5 + $0x20] sm:$0xf]
    %v917 = vld [vmem:[%s5 + $0x24] sm:$0xf]
    %v918 = vld [vmem:[%s5 + $0x28] sm:$0xf]
    %v919 = vld [vmem:[%s5 + $0x2c] sm:$0xf]
    %v920 = vld [vmem:[%s5 + $0x30] sm:$0xf]
    %v921 = vld [vmem:[%s5 + $0x34] sm:$0xf]
    %v922 = vld [vmem:[%s5 + $0x38] sm:$0xf]
    %v923 = vld [vmem:[%s5 + $0x3c] sm:$0xf]
    %v924 = vld [vmem:[%s6] sm:$0x1]
    %v926 = vlaneseq
    %v927 = vshrl.u32 %v926, 7
    %v928 = vsub.s32 0, %v927
    %v929 = vrot.slane %v924, %v928
    %v947 = vunpack.c.l.b16 %v908
    %v948 = vunpack.c.l.b16 %v909
    %v949 = vunpack.c.l.b16 %v910
    %v950 = vunpack.c.l.b16 %v911
    %v951 = vunpack.c.l.b16 %v912
    %v952 = vunpack.c.l.b16 %v913
    %v953 = vunpack.c.l.b16 %v914
    %v954 = vunpack.c.l.b16 %v915
    %v955 = vunpack.c.l.b16 %v916
    %v956 = vunpack.c.l.b16 %v917
    %v957 = vunpack.c.l.b16 %v918
    %v958 = vunpack.c.l.b16 %v919
    %v959 = vunpack.c.l.b16 %v920
    %v960 = vunpack.c.l.b16 %v921
    %v961 = vunpack.c.l.b16 %v922
    %v962 = vunpack.c.l.b16 %v923
    %v963 = vpack.c.b16 %v948, %v947
    %v964 = vpack.c.b16 %v950, %v949
    %v965 = vpack.c.b16 %v952, %v951
    %v966 = vpack.c.b16 %v954, %v953
    %v967 = vpack.c.b16 %v956, %v955
    %v968 = vpack.c.b16 %v958, %v957
    %v969 = vpack.c.b16 %v960, %v959
    %v970 = vpack.c.b16 %v962, %v961
    %979 = vmatprep.subr.bf16.mxu0 0
    %980 = vmatpush1.bf16.msra.mxu0 %v970
    %981 = vmatprep.subr.bf16.mxu0 0
    %982 = vmatpush1.bf16.msra.mxu0 %v969
    %983 = vmatprep.subr.bf16.mxu0 0
    %984 = vmatpush1.bf16.msra.mxu0 %v968
    %985 = vmatprep.subr.bf16.mxu0 0
    %986 = vmatpush1.bf16.msra.mxu0 %v967
    %987 = vmatprep.subr.bf16.mxu0 0
    %988 = vmatpush1.bf16.msra.mxu0 %v966
    %989 = vmatprep.subr.bf16.mxu0 0
    %990 = vmatpush1.bf16.msra.mxu0 %v965
    %991 = vmatprep.subr.bf16.mxu0 0
    %992 = vmatpush1.bf16.msra.mxu0 %v964
    %993 = vmatprep.subr.bf16.mxu0 0
    %994 = vmatpush1.bf16.msra.mxu0 %v963
    %995 = vmatprep.subr.bf16.mxu0 0
    %996 = vmatpush2.bf16.msra.mxu0 0
    %997 = vmatprep.subr.bf16.mxu0 0
    %998 = vmatpush2.bf16.msra.mxu0 0
    %999 = vmatprep.subr.bf16.mxu0 0
    %1000 = vmatpush2.bf16.msra.mxu0 0
    %1001 = vmatprep.subr.bf16.mxu0 0
    %1002 = vmatpush2.bf16.msra.mxu0 0
    %1003 = vmatprep.subr.bf16.mxu0 0
    %1004 = vmatpush2.bf16.msra.mxu0 0
    %1005 = vmatprep.subr.bf16.mxu0 0
    %1006 = vmatpush2.bf16.msra.mxu0 0
    %1007 = vmatprep.subr.bf16.mxu0 0
    %1008 = vmatpush2.bf16.msra.mxu0 0
    %1009 = vmatprep.subr.bf16.mxu0 0
    %1010 = vmatpush2.bf16.msra.mxu0 0
    %1011 = vmatprep.mubr.bf16.mxu0 0
    %1012 = vmatmul.mubr.bf16.gmra.mxu0 %v907
    %v1013 = vpop.f32.mrf.mxu0
    %v1014 = vadd.f32 %v929, %v1013
    %v1015 = vpop.f32.mrf.mxu0
    %v1016 = vpop.f32.mrf.mxu0
    %v1017 = vadd.f32 %v929, %v1016
    %v1018 = vpop.f32.mrf.mxu0
    %1019 = vdwg.mxu0
    %1020 = vst.msk [vmem:[#allocation2] sm:$0xff] %vm622, %v1014
    %1021 = vst.msk [vmem:[#allocation2 + $0x8] sm:$0xff] %vm622, %v1017
    // Predicated region
    $region30: #{simple_nn_forward.1} parent=1 // pred_check
      _
    $region31: #{simple_nn_forward.1} parent=1 // pred_check_branch
      %1023 = sbr.rel (0) target = $region33
    $region32: #{simple_nn_forward.1} parent=1 // pred_region
      %s1025 = ssub.s32 256, 32
      %1026 = vsyncadd [#allocation3], %s1025
      %s1027 = sshll.u32 [#allocation2], 4
      %s1028 = int_to_ptr.vmem [resolvable:$true] %s1027
      %1033 = dma.vmem_to_hbm [thread:$0]  %s1028, 32, %s7, [#allocation3], 32, 32, 2
    $region33: #{simple_nn_forward.1} parent=1 // pred_fallthru
      _
    // Predicated region
    $region34: #{simple_nn_forward.1} parent=1 // pred_check
      _
    $region35: #{simple_nn_forward.1} parent=1 // pred_check_branch
      %1035 = sbr.rel (0) target = $region37
    $region36: #{simple_nn_forward.1} parent=1 // pred_region
      %1036 = dma.done [#allocation3], 256
    $region37: #{simple_nn_forward.1} parent=1 // pred_fallthru
      _
    %1037 = vsyncpa [#allocation3], 1

</llo_original>
